<compile_context>
chip_gen: v5e
topology: v5e:2x2
jax: 0.10.0
libtpu: 0.0.40
codegen_flags: <defaults>
</compile_context>

<pallas_src>
import jax
import jax.numpy as jnp
from jax.experimental import pallas as pl
from jax.experimental.pallas import tpu as pltpu


def _linear_kernel(w_ref, b_ref, xt_ref, o_ref):
    # w_ref : (in_dim,) f32 in SMEM        (scalar weights)
    # b_ref : (1,)      f32 in SMEM        (scalar bias)
    # xt_ref: (in_dim, tile_n) f32 in VMEM (batch along lanes)
    # o_ref : (1, tile_n)      f32 in VMEM (lane-dense output)
    in_dim = xt_ref.shape[0]
    # Start the accumulator at the bias (saves one add vs. adding it last).
    acc = xt_ref[0:1, :] * w_ref[0] + b_ref[0]
    for k in range(1, in_dim):            # static unroll (in_dim = 5)
        acc = acc + xt_ref[k:k + 1, :] * w_ref[k]
    o_ref[...] = acc.astype(o_ref.dtype)


def linear_forward(x, weight, bias, *, tile_n=8192):
    """x: (N, in_dim), weight: (out_dim, in_dim), bias: (out_dim,) — nn.Linear."""
    n, in_dim = x.shape
    out_dim = weight.shape[0]
    assert out_dim == 1, "kernel specialized for the module's output_dim=1"

    # Keep tiles a whole number of 128-lane vregs.
    tile_n = max(128, (tile_n // 128) * 128)

    # Pad the batch (lane) axis to a multiple of 128 and to a whole number of
    # tiles; padded columns simply compute to `bias` and are sliced off below.
    n_pad = pl.cdiv(n, 128) * 128
    if n_pad <= tile_n:
        tile_n = n_pad
    else:
        n_pad = pl.cdiv(n_pad, tile_n) * tile_n

    xt = jnp.pad(x.T, ((0, 0), (0, n_pad - n)))          # (in_dim, n_pad)
    w = weight.reshape(in_dim).astype(jnp.float32)       # (in_dim,) SMEM scalars
    b = bias.reshape(1).astype(jnp.float32)              # (1,)      SMEM scalar

    grid = (n_pad // tile_n,)

    out = pl.pallas_call(
        _linear_kernel,
        out_shape=jax.ShapeDtypeStruct((1, n_pad), x.dtype),
        grid=grid,
        in_specs=[
            pl.BlockSpec(memory_space=pltpu.MemorySpace.SMEM),   # weights
            pl.BlockSpec(memory_space=pltpu.MemorySpace.SMEM),   # bias
            pl.BlockSpec((in_dim, tile_n), lambda i: (0, i)),    # x^T tile
        ],
        out_specs=pl.BlockSpec((1, tile_n), lambda i: (0, i)),
        compiler_params=pltpu.CompilerParams(
            dimension_semantics=("parallel",)),
    )(w, b, xt)

    # Back to PyTorch's (N, out_dim) convention.
    return out[0, :n].reshape(n, out_dim)


if __name__ == "__main__":
    key = jax.random.PRNGKey(0)
    kx, kw, kb = jax.random.split(key, 3)

    batch, input_dim, output_dim = 100, 5, 1

    # Deterministic synthetic parameters (nn.Linear-like uniform init).
    bound = 1.0 / jnp.sqrt(input_dim)
    x = jax.random.normal(kx, (batch, input_dim), dtype=jnp.float32)
    weight = jax.random.uniform(kw, (output_dim, input_dim), dtype=jnp.float32,
                                minval=-bound, maxval=bound)
    bias = jax.random.uniform(kb, (output_dim,), dtype=jnp.float32,
                              minval=-bound, maxval=bound)

    out = linear_forward(x, weight, bias)
    out = jax.block_until_ready(out)

    # Reference check in plain JAX.
    ref = x @ weight.T + bias
    assert out.shape == (batch, output_dim)
    assert jnp.allclose(out, ref, atol=1e-5), "mismatch vs reference"

    print("KERNEL_OK")
</pallas_src>

<mosaic_0001>
module attributes {stable_mosaic.version = 11 : i64} {
  func.func @_linear_kernel(%arg0: i32, %arg1: memref<5xf32, #tpu.memory_space<smem>>, %arg2: memref<1xf32, #tpu.memory_space<smem>>, %arg3: memref<5x128xf32, #tpu.memory_space<vmem>>, %arg4: memref<1x128xf32, #tpu.memory_space<vmem>>) attributes {dimension_semantics = [#tpu.dimension_semantics<parallel>], iteration_bounds = array<i64: 1>, scalar_prefetch = 0 : i64, scratch_operands = 0 : i64, tpu.core_type = #tpu.core_type<tc>, window_params = [{transform_indices = @transform_0, window_bounds = array<i64: 5>}, {transform_indices = @transform_1, window_bounds = array<i64: 1>}, {transform_indices = @transform_2, window_bounds = array<i64: 5, 128>}, {transform_indices = @transform_3, window_bounds = array<i64: 1, 128>}]} {
    %c0 = arith.constant 0 : index
    %c0_0 = arith.constant 0 : index
    %0 = vector.load %arg3[%c0, %c0_0] : memref<5x128xf32, #tpu.memory_space<vmem>>, vector<1x128xf32>
    %c0_1 = arith.constant 0 : index
    %1 = memref.load %arg1[%c0_1] : memref<5xf32, #tpu.memory_space<smem>>
    %2 = vector.broadcast %1 : f32 to vector<1x128xf32>
    %3 = arith.mulf %0, %2 : vector<1x128xf32>
    %c0_2 = arith.constant 0 : index
    %4 = memref.load %arg2[%c0_2] : memref<1xf32, #tpu.memory_space<smem>>
    %5 = vector.broadcast %4 : f32 to vector<1x128xf32>
    %6 = arith.addf %3, %5 : vector<1x128xf32>
    %c1 = arith.constant 1 : index
    %c0_3 = arith.constant 0 : index
    %7 = vector.load %arg3[%c1, %c0_3] : memref<5x128xf32, #tpu.memory_space<vmem>>, vector<1x128xf32>
    %c1_4 = arith.constant 1 : index
    %8 = memref.load %arg1[%c1_4] : memref<5xf32, #tpu.memory_space<smem>>
    %9 = vector.broadcast %8 : f32 to vector<1x128xf32>
    %10 = arith.mulf %7, %9 : vector<1x128xf32>
    %11 = arith.addf %6, %10 : vector<1x128xf32>
    %c2 = arith.constant 2 : index
    %c0_5 = arith.constant 0 : index
    %12 = vector.load %arg3[%c2, %c0_5] : memref<5x128xf32, #tpu.memory_space<vmem>>, vector<1x128xf32>
    %c2_6 = arith.constant 2 : index
    %13 = memref.load %arg1[%c2_6] : memref<5xf32, #tpu.memory_space<smem>>
    %14 = vector.broadcast %13 : f32 to vector<1x128xf32>
    %15 = arith.mulf %12, %14 : vector<1x128xf32>
    %16 = arith.addf %11, %15 : vector<1x128xf32>
    %c3 = arith.constant 3 : index
    %c0_7 = arith.constant 0 : index
    %17 = vector.load %arg3[%c3, %c0_7] : memref<5x128xf32, #tpu.memory_space<vmem>>, vector<1x128xf32>
    %c3_8 = arith.constant 3 : index
    %18 = memref.load %arg1[%c3_8] : memref<5xf32, #tpu.memory_space<smem>>
    %19 = vector.broadcast %18 : f32 to vector<1x128xf32>
    %20 = arith.mulf %17, %19 : vector<1x128xf32>
    %21 = arith.addf %16, %20 : vector<1x128xf32>
    %c4 = arith.constant 4 : index
    %c0_9 = arith.constant 0 : index
    %22 = vector.load %arg3[%c4, %c0_9] : memref<5x128xf32, #tpu.memory_space<vmem>>, vector<1x128xf32>
    %c4_10 = arith.constant 4 : index
    %23 = memref.load %arg1[%c4_10] : memref<5xf32, #tpu.memory_space<smem>>
    %24 = vector.broadcast %23 : f32 to vector<1x128xf32>
    %25 = arith.mulf %22, %24 : vector<1x128xf32>
    %26 = arith.addf %21, %25 : vector<1x128xf32>
    %c0_11 = arith.constant 0 : index
    %c0_12 = arith.constant 0 : index
    %27 = vector.load %arg4[%c0_11, %c0_12] : memref<1x128xf32, #tpu.memory_space<vmem>>, vector<1x128xf32>
    tpu.vector_store %arg4[%c0_11, %c0_12], %26 {strides = array<i32>} : memref<1x128xf32, #tpu.memory_space<vmem>>, vector<1x128xf32>,
    return
  }
  func.func @transform_0(%arg0: i32) -> i32 {
    %c0_i32 = arith.constant 0 : i32
    %c0_i32_0 = arith.constant 0 : i32
    return %c0_i32 : i32
  }
  func.func @transform_1(%arg0: i32) -> i32 {
    %c0_i32 = arith.constant 0 : i32
    %c0_i32_0 = arith.constant 0 : i32
    return %c0_i32 : i32
  }
  func.func @transform_2(%arg0: i32) -> (i32, i32) {
    %c0_i32 = arith.constant 0 : i32
    %c0_i32_0 = arith.constant 0 : i32
    return %c0_i32, %arg0 : i32, i32
  }
  func.func @transform_3(%arg0: i32) -> (i32, i32) {
    %c0_i32 = arith.constant 0 : i32
    %c0_i32_0 = arith.constant 0 : i32
    return %c0_i32, %arg0 : i32, i32
  }
}

</mosaic_0001>

<llo_original>
// kernel: tpu_custom_call.1
$region0: #{tpu_custom_call.1}
  #allocation0 [shape = 'u32[]', space=smem, size = 0x4, offset = 0x4, fixed_abs, tag = 'smem constant byte address 0x4 - core index']
  #allocation1 [shape = 'u32[72,128]{1,0:T(1,128)}', space=vmem, size = 0x9000, scoped, tag = 'internal scratch']
  #allocation2 [shape = 'f32[1]{0:T(128)S(6)}', space=smem, size = 0x200, scoped, tag = 'scoped memory for tpu_custom_call.1']
  %s0 = inlined_call_operand.vmem [shape: f32[5], index: 0, kind: input, shape index: {}]
  %s1 = inlined_call_operand.<no memory space> [shape: f32[1], index: 1, kind: input, shape index: {}]
  %s2 = inlined_call_operand.hbm [shape: f32[5,128], index: 2, kind: input, shape index: {}]
  %s3 = inlined_call_operand.hbm [shape: f32[1,128], index: 3, kind: output, shape index: {}]
  %s4 = sld [smem:[#allocation0]]
  $region30: #{tpu_custom_call.1} parent=0
    _
  %s6 = ssub.s32 1, %s4
  %s7 = scalar_select 0, %s6, %s4
  %8 = sst [smem:[#allocation2]] %s1
  $region1: #{tpu_custom_call.1} parent=0
    #allocation3 [shape = 'u8[512]{0}', space=smem, size = 0x200, scoped, tag = 'input window, operand 0, single buffered']
    #allocation4 [shape = 's32[1]{0}', space=sflag, size = 0x4, scoped, tag = 'scoped memory for tpu_custom_call.1']
    #allocation5 [shape = 's32[1]{0}', space=sflag, size = 0x4, scoped, tag = 'scoped memory for tpu_custom_call.1']
    #allocation6 [shape = 's32[1]{0}', space=sflag, size = 0x4, scoped, tag = 'scoped memory for tpu_custom_call.1']
    #allocation7 [shape = 'u8[4096]{0}', space=vmem, size = 0x1000, scoped, tag = 'input window, operand 2, single buffered']
    #allocation8 [shape = 'u8[512]{0}', space=vmem, size = 0x400, scoped, tag = 'output window, operand 0, single buffered']
    %9 = vsyncpa [#allocation6], 0
    %10 = vsyncpa [#allocation4], 0
    %11 = vsyncpa [#allocation5], 0
    // Predicated region
    $region2: #{tpu_custom_call.1} parent=1 // pred_check
      _
    $region3: #{tpu_custom_call.1} parent=1 // pred_check_branch
      %13 = sbr.rel (0) target = $region5
    $region4: #{tpu_custom_call.1} parent=1 // pred_region
      %15 = vsyncadd [#allocation6], 0
      %s17 = sshll.u32 %s0, 4
      %s18 = int_to_ptr.vmem [resolvable:$true] %s17
      %20 = dma.vmem_to_smem %s18, 16, [#allocation3], [#allocation6]
    $region5: #{tpu_custom_call.1} parent=1 // pred_fallthru
      _
    // Predicated region
    $region6: #{tpu_custom_call.1} parent=1 // pred_check
      _
    $region7: #{tpu_custom_call.1} parent=1 // pred_check_branch
      %22 = sbr.rel (0) target = $region9
    $region8: #{tpu_custom_call.1} parent=1 // pred_region
      _
    $region9: #{tpu_custom_call.1} parent=1 // pred_fallthru
      _
    // Predicated region
    $region10: #{tpu_custom_call.1} parent=1 // pred_check
      _
    $region11: #{tpu_custom_call.1} parent=1 // pred_check_branch
      %24 = sbr.rel (0) target = $region13
    $region12: #{tpu_custom_call.1} parent=1 // pred_region
      %26 = vsyncadd [#allocation4], 0
      %s28 = sshll.u32 %s2, 4
      %s29 = int_to_ptr.hbm [resolvable:$true] %s28
      %s30 = sshll.u32 [#allocation7], 4
      %s31 = int_to_ptr.vmem [resolvable:$true] %s30
      %33 = dma.hbm_to_vmem [thread:$0]  %s29, 128, %s31, [#allocation4]
    $region13: #{tpu_custom_call.1} parent=1 // pred_fallthru
      _
    // Predicated region
    $region14: #{tpu_custom_call.1} parent=1 // pred_check
      _
    $region15: #{tpu_custom_call.1} parent=1 // pred_check_branch
      %35 = sbr.rel (0) target = $region17
    $region16: #{tpu_custom_call.1} parent=1 // pred_region
      %37 = dma.done [#allocation6], 16
    $region17: #{tpu_custom_call.1} parent=1 // pred_fallthru
      _
    // Predicated region
    $region18: #{tpu_custom_call.1} parent=1 // pred_check
      _
    $region19: #{tpu_custom_call.1} parent=1 // pred_check_branch
      %39 = sbr.rel (0) target = $region21
    $region20: #{tpu_custom_call.1} parent=1 // pred_region
      %41 = dma.done [#allocation4], 128
    $region21: #{tpu_custom_call.1} parent=1 // pred_fallthru
      _
    %42 = sfence
    %v43 = vld [vmem:[#allocation7] sm:$0x1]
    %s44 = sld [smem:[#allocation3]]
    %v45 = vstv %s44
    %v46 = vmul.f32 %v43, %v45
    %s47 = sld [smem:[#allocation2]]
    %v48 = vstv %s47
    %v49 = vadd.f32 %v46, %v48
    %v50 = vld [vmem:[#allocation7 + $0x1] sm:$0x1]
    %s51 = sld [smem:[#allocation3 + $0x1]]
    %v52 = vstv %s51
    %v53 = vmul.f32 %v50, %v52
    %v54 = vadd.f32 %v49, %v53
    %v55 = vld [vmem:[#allocation7 + $0x2] sm:$0x1]
    %s56 = sld [smem:[#allocation3 + $0x2]]
    %v57 = vstv %s56
    %v58 = vmul.f32 %v55, %v57
    %v59 = vadd.f32 %v54, %v58
    %v60 = vld [vmem:[#allocation7 + $0x3] sm:$0x1]
    %s61 = sld [smem:[#allocation3 + $0x3]]
    %v62 = vstv %s61
    %v63 = vmul.f32 %v60, %v62
    %v64 = vadd.f32 %v59, %v63
    %v65 = vld [vmem:[#allocation7 + $0x4] sm:$0x1]
    %s66 = sld [smem:[#allocation3 + $0x4]]
    %v67 = vstv %s66
    %v68 = vmul.f32 %v65, %v67
    %v69 = vadd.f32 %v64, %v68
    %70 = vst [vmem:[#allocation8] sm:$0x1] %v69
    // Predicated region
    $region22: #{tpu_custom_call.1} parent=1 // pred_check
      _
    $region23: #{tpu_custom_call.1} parent=1 // pred_check_branch
      %72 = sbr.rel (0) target = $region25
    $region24: #{tpu_custom_call.1} parent=1 // pred_region
      %74 = vsyncadd [#allocation5], 0
      %s76 = sshll.u32 [#allocation8], 4
      %s77 = int_to_ptr.vmem [resolvable:$true] %s76
      %s78 = sshll.u32 %s3, 4
      %s79 = int_to_ptr.hbm [resolvable:$true] %s78
      %81 = dma.vmem_to_hbm [thread:$0]  %s77, 16, %s79, [#allocation5]
    $region25: #{tpu_custom_call.1} parent=1 // pred_fallthru
      _
    // Predicated region
    $region26: #{tpu_custom_call.1} parent=1 // pred_check
      _
    $region27: #{tpu_custom_call.1} parent=1 // pred_check_branch
      %83 = sbr.rel (0) target = $region29
    $region28: #{tpu_custom_call.1} parent=1 // pred_region
      %85 = dma.done [#allocation5], 16
    $region29: #{tpu_custom_call.1} parent=1 // pred_fallthru
      _
    %86 = vsyncpa [#allocation4], 1
    %87 = vsyncpa [#allocation5], 1
    %88 = vsyncpa [#allocation6], 1

</llo_original>
